<compile_context>
chip_gen: v7x
topology: tpu7x:2x2x1
jax: 0.10.0
libtpu: 0.0.40
codegen_flags: <defaults>
</compile_context>

<pallas_src>
import functools

import jax
import jax.numpy as jnp
from jax.experimental import pallas as pl
from jax.experimental.pallas import tpu as pltpu

_LANE = 128


def _axis_mask_kernel(start_ref, width_ref, pos_ref, x_ref, o_ref, *, mask_value):
    """Masked fill of an (rb, cb) tile: 3 VALU ops per data vreg."""
    pos = pos_ref[...]                              # (1, cb)  int32 position along masked axis
    start = start_ref[...]                          # (rb, 1)  int32
    width = width_ref[...]                          # (rb, 1)  int32 (= end - start, >= 0)
    off = (pos - start).astype(jnp.uint32)          # negative -> huge unsigned -> outside band
    band = off < width.astype(jnp.uint32)           # (rb, cb) via broadcasting
    fill = jnp.asarray(mask_value, x_ref.dtype)
    o_ref[...] = jnp.where(band, fill, x_ref[...])


def _compute_band(key, B, C, size_along, mask_param, iid_masks):
    """Per-(b, c) band (start, width), matching torchaudio's rand*param + .long()."""
    k1, k2 = jax.random.split(key)
    if iid_masks:
        value = jax.random.uniform(k1, (B, C)) * mask_param
        min_value = jax.random.uniform(k2, (B, C)) * (size_along - value)
    else:
        v = jax.random.uniform(k1, ()) * mask_param
        m = jax.random.uniform(k2, ()) * (size_along - v)
        value = jnp.broadcast_to(v, (B, C))
        min_value = jnp.broadcast_to(m, (B, C))
    start = min_value.astype(jnp.int32)             # min_value.long()
    width = value.astype(jnp.int32)                 # value.long()  (end = start + width)
    return start, width


def _choose_blocks(rows, cols, itemsize, target_block_bytes=2 * 1024 * 1024):
    """Pick (rb, cb) tile sizes: lane-dense, sublane-aligned, ~2 MiB, >= 2 grid steps."""
    # Sublane multiple per dtype packing: f32 -> 8, bf16 -> 16, int8/fp8 -> 32.
    sub = {4: 8, 2: 16, 1: 32}.get(itemsize, 8)

    # Column block: full width if one sublane-group of rows fits the byte budget,
    # otherwise the widest multiple of 128 lanes that does.
    if cols * sub * itemsize <= target_block_bytes:
        cb = cols
    else:
        cb = max(_LANE, (target_block_bytes // (sub * itemsize)) // _LANE * _LANE)

    # Row block: fill the byte budget given cb; multiple of `sub` or the full row count.
    if rows <= sub:
        rb = rows
    else:
        rb = max(sub, (target_block_bytes // (cb * itemsize)) // sub * sub)
        rb = min(rb, (rows // sub) * sub)

    # v7x has two TensorCores: guarantee >= 2 "parallel" grid steps when the shape allows,
    # so this HBM-bound kernel doesn't leave one core idle on small batches.
    if pl.cdiv(rows, rb) * pl.cdiv(cols, cb) < 2:
        if cols >= 2 * _LANE:
            cb = pl.cdiv(pl.cdiv(cols, 2), _LANE) * _LANE
        elif rows >= 2 * sub:
            rb = max(sub, (pl.cdiv(rows, 2) // sub) * sub)
    return rb, cb


def axis_masking(specgram, key, *, mask_param, axis, iid_masks, mask_value=0.0):
    """JAX/Pallas equivalent of AxisMasking.forward(specgram, mask_value).

    specgram: (B, C, F, T) array.  axis: 1 -> frequency masking, 2 -> time masking.
    For a true in-place masked fill, call under jit with the spectrogram donated
    (jax.jit(..., donate_argnums=...)); otherwise XLA copies the buffer before the
    aliased pallas_call.
    """
    assert specgram.ndim == 4, "kernel expects (B, C, F, T)"
    assert axis in (1, 2), "axis must be 1 (freq) or 2 (time)"
    assert mask_param >= 1
    B, C, F, T = specgram.shape
    mask_dim = axis + 1                     # dim of the 4-D tensor being masked
    size_along = specgram.shape[mask_dim]

    start_bc, width_bc = _compute_band(key, B, C, size_along, mask_param, iid_masks)

    rows, cols = B * C, F * T
    itemsize = specgram.dtype.itemsize
    x_flat = specgram.reshape(rows, cols)
    mask_start = start_bc.reshape(rows, 1)
    mask_width = width_bc.reshape(rows, 1)

    # Position of every flattened column along the masked axis, computed once in the
    # wrapper (hoists the iota and the // / % off the per-step VPU hot path).
    col = jnp.arange(cols, dtype=jnp.int32)
    pos = (col // T if mask_dim == 2 else col % T).reshape(1, cols)

    rb, cb = _choose_blocks(rows, cols, itemsize)
    grid = (pl.cdiv(rows, rb), pl.cdiv(cols, cb))   # col axis innermost

    kernel = functools.partial(_axis_mask_kernel, mask_value=float(mask_value))

    out_flat = pl.pallas_call(
        kernel,
        out_shape=jax.ShapeDtypeStruct((rows, cols), specgram.dtype),
        grid_spec=pltpu.PrefetchScalarGridSpec(
            num_scalar_prefetch=0,
            grid=grid,
            in_specs=[
                pl.BlockSpec((rb, 1), lambda i, j: (i, 0)),    # start (refetched only when i changes)
                pl.BlockSpec((rb, 1), lambda i, j: (i, 0)),    # width (refetched only when i changes)
                pl.BlockSpec((1, cb), lambda i, j: (0, j)),    # column -> axis position
                pl.BlockSpec((rb, cb), lambda i, j: (i, j)),   # specgram tile
            ],
            out_specs=pl.BlockSpec((rb, cb), lambda i, j: (i, j)),
        ),
        compiler_params=pltpu.CompilerParams(
            dimension_semantics=("parallel", "parallel"),
            vmem_limit_bytes=32 * 1024 * 1024,       # blocks budgeted to <= ~8 MiB total
        ),
        input_output_aliases={3: 0},                 # in-place masked fill on the input buffer
        cost_estimate=pl.CostEstimate(
            flops=rows * cols,
            transcendentals=0,
            bytes_accessed=2 * rows * cols * itemsize,
        ),
    )(mask_start, mask_width, pos, x_flat)

    return out_flat.reshape(B, C, F, T)


def _reference(specgram, start_bc, width_bc, mask_dim, mask_value):
    """Pure-JAX reference for verification."""
    size = specgram.shape[mask_dim]
    shape = [1, 1, 1, 1]
    shape[mask_dim] = size
    idx = jnp.arange(size, dtype=jnp.int32).reshape(shape)
    s = start_bc.reshape(start_bc.shape + (1, 1))
    e = (start_bc + width_bc).reshape(start_bc.shape + (1, 1))
    band = (idx >= s) & (idx < e)
    return jnp.where(band, jnp.asarray(mask_value, specgram.dtype), specgram)


if __name__ == "__main__":
    key = jax.random.PRNGKey(0)
    k_data, k_mask = jax.random.split(key)

    B, C, F, T = 2, 4, 16, 16
    x = jax.random.normal(k_data, (B, C, F, T), dtype=jnp.float32)

    # AxisMasking(mask_param=8, axis=2, iid_masks=True) -> iid time masking.
    out = axis_masking(x, k_mask, mask_param=8, axis=2, iid_masks=True, mask_value=0.0)
    out = jax.block_until_ready(out)
    s_bc, w_bc = _compute_band(k_mask, B, C, T, 8, True)
    ref = _reference(x, s_bc, w_bc, mask_dim=3, mask_value=0.0)
    assert out.shape == x.shape and out.dtype == x.dtype
    assert bool(jnp.all(out == ref)), "time-masking mismatch vs reference"

    # Non-iid fallback path (single shared band, freq axis).
    out2 = axis_masking(x, k_mask, mask_param=8, axis=1, iid_masks=False, mask_value=0.0)
    out2 = jax.block_until_ready(out2)
    s2, w2 = _compute_band(k_mask, B, C, F, 8, False)
    ref2 = _reference(x, s2, w2, mask_dim=2, mask_value=0.0)
    assert out2.shape == x.shape and out2.dtype == x.dtype
    assert bool(jnp.all(out2 == ref2)), "freq-masking mismatch vs reference"

    # Small row count (< 8 sublanes) exercises the rb == rows (full-dim) path.
    B3, C3 = 1, 3
    x3 = jax.random.normal(k_data, (B3, C3, F, T), dtype=jnp.float32)
    out3 = axis_masking(x3, k_mask, mask_param=5, axis=2, iid_masks=True, mask_value=-1.0)
    out3 = jax.block_until_ready(out3)
    s3, w3 = _compute_band(k_mask, B3, C3, T, 5, True)
    ref3 = _reference(x3, s3, w3, mask_dim=3, mask_value=-1.0)
    assert bool(jnp.all(out3 == ref3)), "small-batch time-masking mismatch vs reference"

    print("KERNEL_OK")
</pallas_src>

<mosaic_0001>
module attributes {stable_mosaic.version = 11 : i64} {
  func.func @_axis_mask_kernel(%arg0: i32, %arg1: i32, %arg2: memref<8x1xi32, #tpu.memory_space<vmem>>, %arg3: memref<8x1xi32, #tpu.memory_space<vmem>>, %arg4: memref<1x128xi32, #tpu.memory_space<vmem>>, %arg5: memref<8x128xf32, #tpu.memory_space<vmem>>, %arg6: memref<8x128xf32, #tpu.memory_space<vmem>>) attributes {dimension_semantics = [#tpu.dimension_semantics<parallel>, #tpu.dimension_semantics<parallel>], iteration_bounds = array<i64: 1, 2>, scalar_prefetch = 0 : i64, scratch_operands = 0 : i64, tpu.core_type = #tpu.core_type<tc>, window_params = [{transform_indices = @transform_0, window_bounds = array<i64: 8, 1>}, {transform_indices = @transform_1, window_bounds = array<i64: 8, 1>}, {transform_indices = @transform_2, window_bounds = array<i64: 1, 128>}, {transform_indices = @transform_3, window_bounds = array<i64: 8, 128>}, {transform_indices = @transform_4, window_bounds = array<i64: 8, 128>}]} {
    %c0 = arith.constant 0 : index
    %c0_0 = arith.constant 0 : index
    %0 = vector.load %arg4[%c0, %c0_0] : memref<1x128xi32, #tpu.memory_space<vmem>>, vector<1x128xi32>
    %c0_1 = arith.constant 0 : index
    %c0_2 = arith.constant 0 : index
    %1 = vector.load %arg2[%c0_1, %c0_2] : memref<8x1xi32, #tpu.memory_space<vmem>>, vector<8x1xi32>
    %c0_3 = arith.constant 0 : index
    %c0_4 = arith.constant 0 : index
    %2 = vector.load %arg3[%c0_3, %c0_4] : memref<8x1xi32, #tpu.memory_space<vmem>>, vector<8x1xi32>
    %3 = vector.broadcast %0 : vector<1x128xi32> to vector<8x128xi32>
    %4 = vector.broadcast %1 : vector<8x1xi32> to vector<8x128xi32>
    %5 = arith.subi %3, %4 : vector<8x128xi32>
    %6 = vector.broadcast %2 : vector<8x1xi32> to vector<8x128xi32>
    %7 = arith.cmpi ult, %5, %6 : vector<8x128xi32>
    %c0_5 = arith.constant 0 : index
    %c0_6 = arith.constant 0 : index
    %8 = vector.load %arg5[%c0_5, %c0_6] : memref<8x128xf32, #tpu.memory_space<vmem>>, vector<8x128xf32>
    %cst = arith.constant 0.000000e+00 : f32
    %9 = vector.broadcast %cst : f32 to vector<8x128xf32>
    %10 = arith.select %7, %9, %8 : vector<8x128xi1>, vector<8x128xf32>
    %c0_7 = arith.constant 0 : index
    %c0_8 = arith.constant 0 : index
    %11 = vector.load %arg6[%c0_7, %c0_8] : memref<8x128xf32, #tpu.memory_space<vmem>>, vector<8x128xf32>
    tpu.vector_store %arg6[%c0_7, %c0_8], %10 {strides = array<i32>} : memref<8x128xf32, #tpu.memory_space<vmem>>, vector<8x128xf32>,
    return
  }
  func.func @transform_0(%arg0: i32, %arg1: i32) -> (i32, i32) {
    %c0_i32 = arith.constant 0 : i32
    %c0_i32_0 = arith.constant 0 : i32
    return %arg0, %c0_i32 : i32, i32
  }
  func.func @transform_1(%arg0: i32, %arg1: i32) -> (i32, i32) {
    %c0_i32 = arith.constant 0 : i32
    %c0_i32_0 = arith.constant 0 : i32
    return %arg0, %c0_i32 : i32, i32
  }
  func.func @transform_2(%arg0: i32, %arg1: i32) -> (i32, i32) {
    %c0_i32 = arith.constant 0 : i32
    %c0_i32_0 = arith.constant 0 : i32
    return %c0_i32, %arg1 : i32, i32
  }
  func.func @transform_3(%arg0: i32, %arg1: i32) -> (i32, i32) {
    %c0_i32 = arith.constant 0 : i32
    return %arg0, %arg1 : i32, i32
  }
  func.func @transform_4(%arg0: i32, %arg1: i32) -> (i32, i32) {
    %c0_i32 = arith.constant 0 : i32
    return %arg0, %arg1 : i32, i32
  }
}

</mosaic_0001>

<llo_original>
// kernel: tpu_custom_call.1
$region0: #{tpu_custom_call.1}
  #allocation0 [shape = 'u32[]', space=smem, size = 0x4, offset = 0x4, fixed_abs, tag = 'smem constant byte address 0x4 - core index']
  #allocation1 [shape = 'u32[144,128]{1,0:T(1,128)}', space=vmem, size = 0x12000, scoped, tag = 'internal scratch']
  %s0 = inlined_call_operand.vmem [shape: s32[8,1], index: 0, kind: input, shape index: {}]
  %s1 = inlined_call_operand.vmem [shape: s32[8,1], index: 1, kind: input, shape index: {}]
  %s2 = inlined_call_operand.vmem [shape: s32[1,256], index: 2, kind: input, shape index: {}]
  %s3 = inlined_call_operand.hbm [shape: f32[8,256], index: 3, kind: input, shape index: {}, may-alias: {3,4}]
  %s4 = inlined_call_operand.hbm [shape: f32[8,256], index: 4, kind: output, shape index: {}, may-alias: {3,4}]
  %s5 = sld [smem:[#allocation0]]
  $region53: #{tpu_custom_call.1} parent=0
    _
  %s7 = ssub.s32 1, %s5
  %s8 = scalar_select 0, %s7, %s5
  $region1: #{tpu_custom_call.1} parent=0
    #allocation2 [shape = 'u8[8192]{0}', space=vmem, size = 0x2000, scoped, tag = 'input window, operand 3']
    #allocation3 [shape = 's32[2]{0}', space=sflag, size = 0x8, scoped, tag = 'scoped memory for tpu_custom_call.1']
    #allocation4 [shape = 's32[2]{0}', space=sflag, size = 0x8, scoped, tag = 'scoped memory for tpu_custom_call.1']
    #allocation5 [shape = 'u8[8192]{0}', space=vmem, size = 0x2000, scoped, tag = 'output window, operand 0']
    %9 = vsyncpa [#allocation3], 0
    %s10 = scalar_lea.sflag [#allocation3], 1
    %11 = vsyncpa %s10, 0
    %12 = vsyncpa [#allocation4], 0
    %s13 = scalar_lea.sflag [#allocation4], 1
    %14 = vsyncpa %s13, 0
    loop: start=0, step=1, limit=4
    $region2: #{tpu_custom_call.1} parent=1 // loop_pre_header
      _
    $region3: #{tpu_custom_call.1} parent=1 // loop_header
      %s16 = sphi 0, %s20
      %p17 = scmp.ge.s32.totalorder %s16, 4
      %s23 = sphi 0, %s35
      %s24 = sphi 0, %s31
      %s25 = sphi 0, %s23
      %s26 = sphi 0, %s24
      %s27 = sphi 0, %s25
      %s28 = sphi 0, %s26
      %s38 = sphi 0, %s40
      %s41 = sphi 0, %s38
      %s42 = sphi 0, %s41
      %s58 = sphi 0, %s42
      %s64 = sphi 0, %s66
      %s67 = sphi 0, %s64
      %s68 = sphi 0, %s67
      %s84 = sphi 0, %s68
      %s90 = sphi 0, %s92
      %s93 = sphi 0, %s90
      %s94 = sphi 0, %s93
      %s110 = sphi 0, %s94
      %s118 = sphi 0, %s120
      %s121 = sphi 0, %s118
      %s122 = sphi 0, %s121
      %s138 = sphi 0, %s122
      %s146 = sphi 0, %s148
      %s149 = sphi 0, %s146
      %s150 = sphi 0, %s149
      %s166 = sphi 0, %s150
    $region4: #{tpu_custom_call.1} parent=1 // loop_header_branch
      %19 = sbr.rel (%p17) target = $region8
    $region5: #{tpu_custom_call.1} parent=1 // loop_body
      %s21 = ssub.s32 %s16, 1
      %s22 = ssub.s32 %s16, 2
      %s29 = sadd.s32 1, %s24
      %p30 = scmp.ge.s32.totalorder %s29, 2
      %s31 = scalar_select %p30, 0, %s29
      %s32 = sadd.s32 1, %s23
      %s33 = scalar_select %p30, %s32, %s23
      %p34 = scmp.ge.s32.totalorder %s33, 1
      %s35 = scalar_select %p34, 0, %s33
      %s36 = ssub.s32 %s23, %s35
      %p37 = scmp.eq.s32.totalorder %s36, 0
      %s39 = sadd.s32 %s38, 1
      %s40 = scalar_select %p37, %s38, %s39
      %p43 = pneg %p37
      %p44 = scmp.eq.s32.totalorder %s16, 1
      %p45 = por %p43, %p44
      %p46 = scmp.ne.s32.totalorder %s38, %s41
      %p47 = scmp.eq.s32.totalorder %s16, 0
      %p48 = por %p46, %p47
      %p49 = scmp.ne.s32.totalorder %s38, %s41
      %p50 = scmp.eq.s32.totalorder %s21, 1
      %p51 = por %p49, %p50
      %p52 = scmp.ne.s32.totalorder %s41, %s42
      %p53 = scmp.eq.s32.totalorder %s21, 0
      %p54 = por %p52, %p53
      %p55 = scmp.ne.s32.totalorder %s41, %s42
      %p56 = scmp.eq.s32.totalorder %s22, 1
      %p57 = por %p55, %p56
      %p59 = scmp.ne.s32.totalorder %s42, %s58
      %p60 = scmp.eq.s32.totalorder %s22, 0
      %p61 = por %p59, %p60
      %s62 = ssub.s32 %s23, %s35
      %p63 = scmp.eq.s32.totalorder %s62, 0
      %s65 = sadd.s32 %s64, 1
      %s66 = scalar_select %p63, %s64, %s65
      %p69 = pneg %p63
      %p70 = scmp.eq.s32.totalorder %s16, 1
      %p71 = por %p69, %p70
      %p72 = scmp.ne.s32.totalorder %s64, %s67
      %p73 = scmp.eq.s32.totalorder %s16, 0
      %p74 = por %p72, %p73
      %p75 = scmp.ne.s32.totalorder %s64, %s67
      %p76 = scmp.eq.s32.totalorder %s21, 1
      %p77 = por %p75, %p76
      %p78 = scmp.ne.s32.totalorder %s67, %s68
      %p79 = scmp.eq.s32.totalorder %s21, 0
      %p80 = por %p78, %p79
      %p81 = scmp.ne.s32.totalorder %s67, %s68
      %p82 = scmp.eq.s32.totalorder %s22, 1
      %p83 = por %p81, %p82
      %p85 = scmp.ne.s32.totalorder %s68, %s84
      %p86 = scmp.eq.s32.totalorder %s22, 0
      %p87 = por %p85, %p86
      %s88 = ssub.s32 %s24, %s31
      %p89 = scmp.eq.s32.totalorder %s88, 0
      %s91 = sadd.s32 %s90, 1
      %s92 = scalar_select %p89, %s90, %s91
      %p95 = pneg %p89
      %p96 = scmp.eq.s32.totalorder %s16, 1
      %p97 = por %p95, %p96
      %p98 = scmp.ne.s32.totalorder %s90, %s93
      %p99 = scmp.eq.s32.totalorder %s16, 0
      %p100 = por %p98, %p99
      %p101 = scmp.ne.s32.totalorder %s90, %s93
      %p102 = scmp.eq.s32.totalorder %s21, 1
      %p103 = por %p101, %p102
      %p104 = scmp.ne.s32.totalorder %s93, %s94
      %p105 = scmp.eq.s32.totalorder %s21, 0
      %p106 = por %p104, %p105
      %p107 = scmp.ne.s32.totalorder %s93, %s94
      %p108 = scmp.eq.s32.totalorder %s22, 1
      %p109 = por %p107, %p108
      %p111 = scmp.ne.s32.totalorder %s94, %s110
      %p112 = scmp.eq.s32.totalorder %s22, 0
      %p113 = por %p111, %p112
      %s114 = ssub.s32 %s23, %s35
      %s115 = ssub.s32 %s24, %s31
      %s116 = sor.u32 %s114, %s115
      %p117 = scmp.eq.s32.totalorder %s116, 0
      %s119 = sadd.s32 %s118, 1
      %s120 = scalar_select %p117, %s118, %s119
      %p123 = pneg %p117
      %p124 = scmp.eq.s32.totalorder %s16, 1
      %p125 = por %p123, %p124
      %p126 = scmp.ne.s32.totalorder %s118, %s121
      %p127 = scmp.eq.s32.totalorder %s16, 0
      %p128 = por %p126, %p127
      %p129 = scmp.ne.s32.totalorder %s118, %s121
      %p130 = scmp.eq.s32.totalorder %s21, 1
      %p131 = por %p129, %p130
      %p132 = scmp.ne.s32.totalorder %s121, %s122
      %p133 = scmp.eq.s32.totalorder %s21, 0
      %p134 = por %p132, %p133
      %p135 = scmp.ne.s32.totalorder %s121, %s122
      %p136 = scmp.eq.s32.totalorder %s22, 1
      %p137 = por %p135, %p136
      %p139 = scmp.ne.s32.totalorder %s122, %s138
      %p140 = scmp.eq.s32.totalorder %s22, 0
      %p141 = por %p139, %p140
      %s142 = ssub.s32 %s23, %s35
      %s143 = ssub.s32 %s24, %s31
      %s144 = sor.u32 %s142, %s143
      %p145 = scmp.eq.s32.totalorder %s144, 0
      %s147 = sadd.s32 %s146, 1
      %s148 = scalar_select %p145, %s146, %s147
      %p151 = pneg %p145
      %p152 = scmp.eq.s32.totalorder %s16, 1
      %p153 = por %p151, %p152
      %p154 = scmp.ne.s32.totalorder %s146, %s149
      %p155 = scmp.eq.s32.totalorder %s16, 0
      %p156 = por %p154, %p155
      %p157 = scmp.ne.s32.totalorder %s146, %s149
      %p158 = scmp.eq.s32.totalorder %s21, 1
      %p159 = por %p157, %p158
      %p160 = scmp.ne.s32.totalorder %s149, %s150
      %p161 = scmp.eq.s32.totalorder %s21, 0
      %p162 = por %p160, %p161
      %p163 = scmp.ne.s32.totalorder %s149, %s150
      %p164 = scmp.eq.s32.totalorder %s22, 1
      %p165 = por %p163, %p164
      %p167 = scmp.ne.s32.totalorder %s150, %s166
      %p168 = scmp.eq.s32.totalorder %s22, 0
      %p169 = por %p167, %p168
      %p170 = scmp.le.s32.totalorder 1, %s16
      %p171 = scmp.lt.s32.totalorder %s16, 3
      %p172 = pnand %p170, %p171
      %p173 = pneg %p172
      // Predicated region
      $region9: #{tpu_custom_call.1} parent=5 // pred_check
        _
      $region10: #{tpu_custom_call.1} parent=5 // pred_check_branch
        %175 = sbr.rel (%p172) target = $region12
      $region11: #{tpu_custom_call.1} parent=5 // pred_region
        %s176 = ssub.s32 %s16, 1
        // Predicated region
        $region13: #{tpu_custom_call.1} parent=11 // pred_check
          %p177 = pneg %p54
        $region14: #{tpu_custom_call.1} parent=11 // pred_check_branch
          %179 = sbr.rel (%p177) target = $region16
        $region15: #{tpu_custom_call.1} parent=11 // pred_region
          %p180 = scmp.lt.s32.totalorder %s25, 0
          %s181 = scalar_select %p180, %s25, 0
          %s182 = smul.addr %s181, 8
          %s183 = scalar_lea.vmem %s0, %s182
        $region16: #{tpu_custom_call.1} parent=11 // pred_fallthru
          _
        // Predicated region
        $region17: #{tpu_custom_call.1} parent=11 // pred_check
          %p184 = pneg %p80
        $region18: #{tpu_custom_call.1} parent=11 // pred_check_branch
          %186 = sbr.rel (%p184) target = $region20
        $region19: #{tpu_custom_call.1} parent=11 // pred_region
          %p187 = scmp.lt.s32.totalorder %s25, 0
          %s188 = scalar_select %p187, %s25, 0
          %s189 = smul.addr %s188, 8
          %s190 = scalar_lea.vmem %s1, %s189
        $region20: #{tpu_custom_call.1} parent=11 // pred_fallthru
          _
      $region12: #{tpu_custom_call.1} parent=5 // pred_fallthru
        _
      %p191 = scmp.lt.s32.totalorder %s16, 2
      // Predicated region
      $region21: #{tpu_custom_call.1} parent=5 // pred_check
        %p192 = pneg %p191
      $region22: #{tpu_custom_call.1} parent=5 // pred_check_branch
        %194 = sbr.rel (%p192) target = $region24
      $region23: #{tpu_custom_call.1} parent=5 // pred_region
        // Predicated region
        $region25: #{tpu_custom_call.1} parent=23 // pred_check
          %p195 = pneg %p100
        $region26: #{tpu_custom_call.1} parent=23 // pred_check_branch
          %197 = sbr.rel (%p195) target = $region28
        $region27: #{tpu_custom_call.1} parent=23 // pred_region
          %p198 = scmp.lt.s32.totalorder %s24, 1
          %s199 = scalar_select %p198, %s24, 1
          %s200 = scalar_lea.vmem %s2, %s199
        $region28: #{tpu_custom_call.1} parent=23 // pred_fallthru
          _
        // Predicated region
        $region29: #{tpu_custom_call.1} parent=23 // pred_check
          %p201 = pneg %p128
        $region30: #{tpu_custom_call.1} parent=23 // pred_check_branch
          %203 = sbr.rel (%p201) target = $region32
        $region31: #{tpu_custom_call.1} parent=23 // pred_region
          %s204 = sand.u32 %s118, 1
          %s205 = scalar_lea.sflag [#allocation3], %s204
          %s206 = sand.u32 %s118, 1
          %s207 = smul.addr %s206, 8
          %s208 = scalar_lea.vmem [#allocation2], %s207
          %s210 = ssub.s32 128, 128
          %211 = vsyncadd %s205, %s210
          %s212 = smul.addr %s23, 2
          %s213 = sadd.s32 %s24, %s212
          %s214 = smul.addr %s213, 128
          %s215 = scalar_lea.hbm %s3, %s214
          %s217 = sshll.u32 %s208, 4
          %s218 = int_to_ptr.vmem [resolvable:$true] %s217
          %220 = dma.hbm_to_vmem [thread:$0]  %s215, 128, %s218, %s205
        $region32: #{tpu_custom_call.1} parent=23 // pred_fallthru
          _
      $region24: #{tpu_custom_call.1} parent=5 // pred_fallthru
        _
      %p221 = scmp.le.s32.totalorder 1, %s16
      %p222 = scmp.lt.s32.totalorder %s16, 3
      %p223 = pnand %p221, %p222
      %p224 = pneg %p223
      // Predicated region
      $region33: #{tpu_custom_call.1} parent=5 // pred_check
        _
      $region34: #{tpu_custom_call.1} parent=5 // pred_check_branch
        %226 = sbr.rel (%p223) target = $region36
      $region35: #{tpu_custom_call.1} parent=5 // pred_region
        %s227 = ssub.s32 %s16, 1
        %s228 = sand.u32 %s121, 1
        %s229 = scalar_lea.sflag [#allocation3], %s228
        %s230 = sand.u32 %s121, 1
        %s231 = smul.addr %s230, 8
        %s232 = scalar_lea.vmem [#allocation2], %s231
        // Predicated region
        $region37: #{tpu_custom_call.1} parent=35 // pred_check
          %p233 = pneg %p134
        $region38: #{tpu_custom_call.1} parent=35 // pred_check_branch
          %235 = sbr.rel (%p233) target = $region40
        $region39: #{tpu_custom_call.1} parent=35 // pred_region
          %236 = dma.done %s229, 128
        $region40: #{tpu_custom_call.1} parent=35 // pred_fallthru
          _
        %p237 = scmp.lt.s32.totalorder %s25, 0
        %s238 = scalar_select %p237, %s25, 0
        %s239 = smul.addr %s238, 8
        %s240 = scalar_lea.vmem %s0, %s239
        %p241 = pneg %p54
        %p242 = pneg %p51
        %p243 = scmp.lt.s32.totalorder %s25, 0
        %s244 = scalar_select %p243, %s25, 0
        %s245 = smul.addr %s244, 8
        %s246 = scalar_lea.vmem %s1, %s245
        %p247 = pneg %p80
        %p248 = pneg %p77
        %p249 = scmp.lt.s32.totalorder %s26, 1
        %s250 = scalar_select %p249, %s26, 1
        %s251 = scalar_lea.vmem %s2, %s250
        %p252 = pneg %p106
        %p253 = pneg %p103
        %s254 = sand.u32 %s121, 1
        %s255 = scalar_lea.sflag [#allocation3], %s254
        %s256 = sand.u32 %s121, 1
        %s257 = smul.addr %s256, 8
        %s258 = scalar_lea.vmem [#allocation2], %s257
        %p259 = pneg %p134
        %p260 = pneg %p131
        %p261 = pneg %p162
        %p262 = pneg %p159
        %s263 = sand.u32 %s149, 1
        %s264 = scalar_lea.sflag [#allocation4], %s263
        %s265 = sand.u32 %s149, 1
        %s266 = smul.addr %s265, 8
        %s267 = scalar_lea.vmem [#allocation5], %s266
        %p268 = scmp.lt.s32.totalorder %s25, 0
        %s269 = scalar_select %p268, %s25, 0
        %s270 = smul.addr %s269, 8
        %s271 = scalar_lea.vmem %s0, %s270
        %p272 = scmp.lt.s32.totalorder %s25, 0
        %s273 = scalar_select %p272, %s25, 0
        %s274 = smul.addr %s273, 8
        %s275 = scalar_lea.vmem %s1, %s274
        %p276 = scmp.lt.s32.totalorder %s26, 1
        %s277 = scalar_select %p276, %s26, 1
        %s278 = scalar_lea.vmem %s2, %s277
        %v279 = vld [vmem:[%s278] sm:$0x1]
        %v280 = vld [vmem:[%s271] sm:$0xff]
        %v281 = vld [vmem:[%s275] sm:$0xff]
        %v282 = vlaneseq
        %v283 = vshrl.u32 %v282, 7
        %v284 = vsub.s32 0, %v283
        %v285 = vrot.slane %v279, %v284
        %286 = vset.pattern.permute.xlu0 0
        %287 = vperm.xlu0 %286, %v280
        %v288 = vpop.permute.xlu0 %287
        %v289 = vsub.s32 %v285, %v288
        %290 = vset.pattern.permute.xlu0 0
        %291 = vperm.xlu0 %290, %v281
        %v292 = vpop.permute.xlu0 %291
        %vm293 = vcmp.lt.u32.totalorder %v289, %v292
        %v294 = vld [vmem:[%s232] sm:$0xff]
        %v295 = vsel %vm293, 0.0, %v294
        %296 = vst [vmem:[%s267] sm:$0xff] %v295
        %s297 = sand.u32 %s149, 1
        %s298 = scalar_lea.sflag [#allocation4], %s297
        %s299 = sand.u32 %s149, 1
        %s300 = smul.addr %s299, 8
        %s301 = scalar_lea.vmem [#allocation5], %s300
        // Predicated region
        $region41: #{tpu_custom_call.1} parent=35 // pred_check
          %p302 = pneg %p159
        $region42: #{tpu_custom_call.1} parent=35 // pred_check_branch
          %304 = sbr.rel (%p302) target = $region44
        $region43: #{tpu_custom_call.1} parent=35 // pred_region
          %s306 = ssub.s32 128, 128
          %307 = vsyncadd %s298, %s306
          %s308 = smul.addr %s25, 2
          %s309 = sadd.s32 %s26, %s308
          %s310 = smul.addr %s309, 128
          %s311 = scalar_lea.hbm %s4, %s310
          %s313 = sshll.u32 %s301, 4
          %s314 = int_to_ptr.vmem [resolvable:$true] %s313
          %316 = dma.vmem_to_hbm [thread:$0]  %s314, 128, %s311, %s298
        $region44: #{tpu_custom_call.1} parent=35 // pred_fallthru
          _
      $region36: #{tpu_custom_call.1} parent=5 // pred_fallthru
        _
      %p317 = scmp.le.s32.totalorder 2, %s16
      // Predicated region
      $region45: #{tpu_custom_call.1} parent=5 // pred_check
        %p318 = pneg %p317
      $region46: #{tpu_custom_call.1} parent=5 // pred_check_branch
        %320 = sbr.rel (%p318) target = $region48
      $region47: #{tpu_custom_call.1} parent=5 // pred_region
        %s321 = ssub.s32 %s16, 2
        // Predicated region
        $region49: #{tpu_custom_call.1} parent=47 // pred_check
          %p322 = pneg %p165
        $region50: #{tpu_custom_call.1} parent=47 // pred_check_branch
          %324 = sbr.rel (%p322) target = $region52
        $region51: #{tpu_custom_call.1} parent=47 // pred_region
          %s325 = sand.u32 %s150, 1
          %s326 = scalar_lea.sflag [#allocation4], %s325
          %s327 = sand.u32 %s150, 1
          %s328 = smul.addr %s327, 8
          %s329 = scalar_lea.vmem [#allocation5], %s328
          %330 = dma.done %s326, 128
        $region52: #{tpu_custom_call.1} parent=47 // pred_fallthru
          _
      $region48: #{tpu_custom_call.1} parent=5 // pred_fallthru
        _
    $region6: #{tpu_custom_call.1} parent=1 // loop_footer
      %s20 = sadd.s32 1, %s16
    $region7: #{tpu_custom_call.1} parent=1 // loop_footer_branch
      %15 = sbr.rel target = $region3
    $region8: #{tpu_custom_call.1} parent=1 // loop_exit
      _
    %331 = vsyncpa [#allocation3], 1
    %s332 = scalar_lea.sflag [#allocation3], 1
    %333 = vsyncpa %s332, 1
    %334 = vsyncpa [#allocation4], 1
    %s335 = scalar_lea.sflag [#allocation4], 1
    %336 = vsyncpa %s335, 1

</llo_original>
